<compile_context>
chip_gen: v7x
topology: tpu7x:2x2x1
jax: 0.10.0
libtpu: 0.0.40
codegen_flags: <defaults>
</compile_context>

<pallas_src>
import functools

import numpy as np
import jax
import jax.numpy as jnp
from jax.experimental import pallas as pl
from jax.experimental.pallas import tpu as pltpu

# ----------------------------- config (matches Cfg) -----------------------------
RPN_CLOBBER_POSITIVES = False
RPN_NEGATIVE_OVERLAP = 0.3
RPN_POSITIVE_OVERLAP = 0.7
RPN_FG_FRACTION = 0.5
RPN_BATCHSIZE = 256
RPN_BBOX_INSIDE_WEIGHTS = (1.0, 1.0, 1.0, 1.0)
RPN_POSITIVE_WEIGHT = -1.0  # < 0 -> uniform 1/num_examples outside weights

_PAD_COORD = -1e8  # sentinel for padded anchors: guaranteed "outside", IoU == 0, no NaNs


# ----------------------- anchor generation (numpy, verbatim) --------------------
def _whctrs(anchor):
    w = anchor[2] - anchor[0] + 1
    h = anchor[3] - anchor[1] + 1
    x_ctr = anchor[0] + 0.5 * (w - 1)
    y_ctr = anchor[1] + 0.5 * (h - 1)
    return (w, h, x_ctr, y_ctr)


def _mkanchors(ws, hs, x_ctr, y_ctr):
    ws = ws[:, np.newaxis]
    hs = hs[:, np.newaxis]
    anchors = np.hstack((x_ctr - 0.5 * (ws - 1), y_ctr - 0.5 * (hs - 1),
                         x_ctr + 0.5 * (ws - 1), y_ctr + 0.5 * (hs - 1)))
    return anchors


def generate_anchors(base_size=16, ratios=(0.5, 1, 2), scales=(8, 16, 32)):
    base_anchor = np.array([1, 1, base_size, base_size]) - 1
    w, h, x_ctr, y_ctr = _whctrs(base_anchor)
    final_anchors = []
    for ratio in ratios:
        w_ratio = w * np.sqrt(ratio)
        h_ratio = h / np.sqrt(ratio)
        for scale in scales:
            sw = w_ratio * scale
            sh = h_ratio * scale
            final_anchors.append(_mkanchors(np.array([sw]), np.array([sh]), x_ctr, y_ctr))
    return np.vstack(final_anchors)


# -------------------------------- Pallas kernel ---------------------------------
def _anchor_target_kernel(im_ref, gt_ref, anchors_ref, out_ref, *, allowed_border, num_gt):
    """Fused IoU / label / bbox-target assignment on dense (R, 128) anchor planes.

    im_ref      : SMEM (3,)        f32  -> (im_height, im_width, scale)
    gt_ref      : SMEM (4*num_gt,) f32  -> flattened gt boxes (x1, y1, x2, y2) * M
    anchors_ref : VMEM (4, R, 128) f32  -> x1/y1/x2/y2 planes, anchors A-major, padded
    out_ref     : VMEM (5, R, 128) f32  -> rows 0-3: dx/dy/dw/dh, row 4: labels (-1/0/1)
    """
    im_h = im_ref[0]
    im_w = im_ref[1]

    ax1 = anchors_ref[0]                          # (R, 128) dense planes
    ay1 = anchors_ref[1]
    ax2 = anchors_ref[2]
    ay2 = anchors_ref[3]

    inside = ((ax1 >= -allowed_border) & (ay1 >= -allowed_border) &
              (ax2 < im_w + allowed_border) & (ay2 < im_h + allowed_border))

    ex_w = ax2 - ax1 + 1.0
    ex_h = ay2 - ay1 + 1.0
    a_area = ex_w * ex_h

    # Single fused pass over the (few) gt boxes:
    #  - running per-anchor max overlap + argmax-matched gt coords (first-index tie break)
    #  - per-gt max over *inside* anchors and the resulting "best anchor for this gt" mask
    max_ov = None
    gt_match = None
    sel_gx1 = sel_gy1 = sel_gx2 = sel_gy2 = None
    for k in range(num_gt):
        gx1 = gt_ref[4 * k + 0]
        gy1 = gt_ref[4 * k + 1]
        gx2 = gt_ref[4 * k + 2]
        gy2 = gt_ref[4 * k + 3]
        g_area = (gx2 - gx1 + 1.0) * (gy2 - gy1 + 1.0)

        iw = jnp.minimum(ax2, gx2) - jnp.maximum(ax1, gx1) + 1.0
        ih = jnp.minimum(ay2, gy2) - jnp.maximum(ay1, gy1) + 1.0
        inter = iw * ih
        valid = (iw > 0.0) & (ih > 0.0)
        ua = jnp.where(valid, a_area + g_area - inter, 1.0)
        ov = jnp.where(valid, inter / ua, 0.0)            # (R, 128) IoU with gt k

        gt_max_k = jnp.max(jnp.where(inside, ov, -1.0))   # scalar: max over inside anchors
        match_k = ov == gt_max_k

        if max_ov is None:
            max_ov = ov
            gt_match = match_k
            sel_gx1 = gx1 + jnp.zeros_like(ov)
            sel_gy1 = gy1 + jnp.zeros_like(ov)
            sel_gx2 = gx2 + jnp.zeros_like(ov)
            sel_gy2 = gy2 + jnp.zeros_like(ov)
        else:
            gt_match = gt_match | match_k
            better = ov > max_ov                           # strict > == first-index argmax
            max_ov = jnp.where(better, ov, max_ov)
            sel_gx1 = jnp.where(better, gx1, sel_gx1)
            sel_gy1 = jnp.where(better, gy1, sel_gy1)
            sel_gx2 = jnp.where(better, gx2, sel_gx2)
            sel_gy2 = jnp.where(better, gy2, sel_gy2)

    gt_match = gt_match & inside

    # label assignment (RPN_CLOBBER_POSITIVES == False path), _unmap fill = -1 outside
    labels = jnp.full_like(max_ov, -1.0)
    labels = jnp.where(max_ov < RPN_NEGATIVE_OVERLAP, 0.0, labels)
    labels = jnp.where(gt_match, 1.0, labels)
    labels = jnp.where(max_ov >= RPN_POSITIVE_OVERLAP, 1.0, labels)
    labels = jnp.where(inside, labels, -1.0)

    # bbox regression targets against the argmax-matched gt box.
    # TODO(synk): _compute_targets is not defined in the reference file; using the
    # standard Faster R-CNN bbox_transform (dx, dy, dw, dh) here.
    ex_cx = ax1 + 0.5 * ex_w
    ex_cy = ay1 + 0.5 * ex_h
    gt_w = sel_gx2 - sel_gx1 + 1.0
    gt_h = sel_gy2 - sel_gy1 + 1.0
    gt_cx = sel_gx1 + 0.5 * gt_w
    gt_cy = sel_gy1 + 0.5 * gt_h

    zero = jnp.zeros_like(ex_w)
    out_ref[0] = jnp.where(inside, (gt_cx - ex_cx) / ex_w, zero)
    out_ref[1] = jnp.where(inside, (gt_cy - ex_cy) / ex_h, zero)
    out_ref[2] = jnp.where(inside, jnp.log(gt_w / ex_w), zero)
    out_ref[3] = jnp.where(inside, jnp.log(gt_h / ex_h), zero)
    out_ref[4] = labels


# ----------------------------------- glue ----------------------------------------
def _subsample_labels(labels, value, limit, kmax, key):
    """Randomly disable (set to -1) labels == value so at most `limit` remain.

    Same semantics as the torch.randperm subsampling; implemented with lax.top_k over
    random priorities (kmax is a static upper bound on `limit`).
    """
    mask = labels == value
    cnt = jnp.sum(mask)
    pri = jax.random.uniform(key, labels.shape)
    pri = jnp.where(mask, pri, jnp.inf)
    # `limit` smallest priorities among the masked elements are kept.
    neg_topk, _ = jax.lax.top_k(-pri, kmax)
    sorted_small = -neg_topk                       # ascending smallest-kmax priorities
    idx = jnp.clip(limit - 1, 0, kmax - 1)
    thr = sorted_small[idx]
    keep = mask & (pri <= thr)
    disabled = jnp.where(mask & jnp.logical_not(keep), -1.0, labels)
    return jnp.where(cnt > limit, disabled, labels)


def anchor_target_forward(rpn_cls_score, gt_boxes, im_info, rng_key=None, *,
                          feat_stride=16, scales=(8, 16, 32), allowed_border=0):
    assert rpn_cls_score.shape[0] == 1, "Only single item batches are supported"
    H, W = int(rpn_cls_score.shape[-2]), int(rpn_cls_score.shape[-1])
    M = int(gt_boxes.shape[0])
    # TODO(synk): the M == 0 gt-box path of the reference module is not implemented.
    assert M >= 1, "at least one gt box required"

    base_anchors = jnp.asarray(
        generate_anchors(scales=np.array(scales)).astype(np.float32))      # (A, 4)
    A = int(base_anchors.shape[0])
    K = H * W
    N = A * K
    R = int(np.ceil(N / 1024.0)) * 8          # sublane rows, multiple of 8
    NP = R * 128

    # A-major anchor enumeration (n = a*H*W + h*W + w) built per coordinate so the kernel
    # input is already coordinate-plane / lane-dense with no wrapper transpose.
    fs = float(feat_stride)
    sx = jnp.arange(W, dtype=jnp.float32) * fs
    sy = jnp.arange(H, dtype=jnp.float32) * fs
    shift_x = jnp.broadcast_to(sx[None, :], (H, W)).reshape(K)
    shift_y = jnp.broadcast_to(sy[:, None], (H, W)).reshape(K)
    shifts = (shift_x, shift_y, shift_x, shift_y)

    pad = jnp.full((NP - N,), _PAD_COORD, jnp.float32)
    planes = []
    for c in range(4):
        v = (base_anchors[:, c][:, None] + shifts[c][None, :]).reshape(N)
        planes.append(jnp.concatenate([v, pad]).reshape(R, 128))
    anchors_planes = jnp.stack(planes, axis=0)                             # (4, R, 128)

    im_vec = im_info[0, :3].astype(jnp.float32)                            # (3,)
    gt_flat = gt_boxes[:, :4].astype(jnp.float32).reshape(4 * M)           # (4*M,)

    # ---- Pallas kernel: fused overlaps + labels + bbox targets (single launch) ----
    packed = pl.pallas_call(
        functools.partial(_anchor_target_kernel,
                          allowed_border=float(allowed_border), num_gt=M),
        out_shape=jax.ShapeDtypeStruct((5, R, 128), jnp.float32),
        in_specs=[pl.BlockSpec(memory_space=pltpu.MemorySpace.SMEM),
                  pl.BlockSpec(memory_space=pltpu.MemorySpace.SMEM),
                  pl.BlockSpec(memory_space=pltpu.MemorySpace.VMEM)],
        out_specs=pl.BlockSpec(memory_space=pltpu.MemorySpace.VMEM),
    )(im_vec, gt_flat, anchors_planes)

    targets_flat = packed[:4].reshape(4, NP)[:, :N]                        # (4, N)
    labels = packed[4].reshape(NP)[:N]                                     # (N,)

    # ---- random fg / bg subsampling (glue; torch.randperm-equivalent semantics) ----
    # TODO(synk): not bit-for-bit reproducible with torch.randperm; same distribution.
    if rng_key is None:
        rng_key = jax.random.PRNGKey(0)
    kf, kb = jax.random.split(rng_key)
    num_fg = int(RPN_FG_FRACTION * RPN_BATCHSIZE)
    labels = _subsample_labels(labels, 1.0, num_fg, num_fg, kf)
    num_bg = RPN_BATCHSIZE - jnp.sum(labels == 1.0)
    labels = _subsample_labels(labels, 0.0, num_bg, RPN_BATCHSIZE, kb)

    # ---- inside / outside weights: trivial broadcasts, plain JAX (XLA fuses) ----
    posf = (labels == 1.0).astype(jnp.float32)
    validf = (labels >= 0.0).astype(jnp.float32)
    num_ex = jnp.sum(validf)
    uw = jnp.where(num_ex > 0.0, 1.0 / jnp.maximum(num_ex, 1.0), 0.0)
    inside_w_vec = jnp.asarray(RPN_BBOX_INSIDE_WEIGHTS, jnp.float32).reshape(1, 4, 1, 1)

    bbox_inside_weights = (posf.reshape(A, 1, H, W) * inside_w_vec).reshape(1, A * 4, H, W)
    bbox_outside_weights = jnp.broadcast_to(
        (validf * uw).reshape(A, 1, H, W), (A, 4, H, W)).reshape(1, A * 4, H, W)

    # ---- final PyTorch NCHW layouts (labels: pure reshape thanks to A-major order) ----
    labels_out = labels.reshape(1, 1, A * H, W)
    bbox_targets = targets_flat.reshape(4, A, H, W).transpose(1, 0, 2, 3).reshape(1, A * 4, H, W)
    return labels_out, bbox_targets, bbox_inside_weights, bbox_outside_weights


# ----------------------------------- main -----------------------------------------
if __name__ == "__main__":
    key = jax.random.PRNGKey(0)
    k1, k2, k3 = jax.random.split(key, 3)

    A = 9               # 3 ratios x 3 scales
    H = W = 16          # feature map spatial size
    feat_stride = 16
    M = 4               # number of gt boxes

    # rpn_cls_score only provides the (H, W) shape
    rpn_cls_score = jax.random.normal(k3, (1, 2 * A, H, W), dtype=jnp.float32)

    # deterministic gt boxes inside a 256x256 image: (x1, y1, x2, y2, label)
    ctr = jax.random.uniform(k1, (M, 2), minval=60.0, maxval=200.0)
    size = jax.random.uniform(k2, (M, 2), minval=40.0, maxval=160.0)
    x1y1 = jnp.clip(ctr - size / 2.0, 0.0, 255.0)
    x2y2 = jnp.clip(ctr + size / 2.0, 0.0, 255.0)
    gt_boxes = jnp.concatenate([x1y1, x2y2, jnp.ones((M, 1), jnp.float32)], axis=1)  # (M, 5)

    im_info = jnp.array([[256.0, 256.0, 1.0]], dtype=jnp.float32)  # (1, 3)

    fwd = jax.jit(functools.partial(anchor_target_forward,
                                    feat_stride=feat_stride, scales=(8, 16, 32),
                                    allowed_border=0))
    outs = fwd(rpn_cls_score, gt_boxes, im_info, jax.random.PRNGKey(0))
    for o in outs:
        jax.block_until_ready(o)

    labels_out, bbox_targets, biw, bow = outs
    assert labels_out.shape == (1, 1, A * H, W)
    assert bbox_targets.shape == (1, A * 4, H, W)
    assert biw.shape == (1, A * 4, H, W)
    assert bow.shape == (1, A * 4, H, W)
    assert bool(jnp.all(jnp.isfinite(bbox_targets)))
    assert bool(jnp.all(jnp.isfinite(bow)))
    print("KERNEL_OK")
</pallas_src>

<mosaic_0001>
module attributes {stable_mosaic.version = 11 : i64} {
  func.func @_anchor_target_kernel(%arg0: memref<3xf32, #tpu.memory_space<smem>>, %arg1: memref<16xf32, #tpu.memory_space<smem>>, %arg2: memref<4x24x128xf32, #tpu.memory_space<vmem>>, %arg3: memref<5x24x128xf32, #tpu.memory_space<vmem>>) attributes {dimension_semantics = [], scalar_prefetch = 0 : i64, scratch_operands = 0 : i64, tpu.core_type = #tpu.core_type<tc>} {
    %c0 = arith.constant 0 : index
    %0 = memref.load %arg0[%c0] : memref<3xf32, #tpu.memory_space<smem>>
    %c1 = arith.constant 1 : index
    %1 = memref.load %arg0[%c1] : memref<3xf32, #tpu.memory_space<smem>>
    %c0_0 = arith.constant 0 : index
    %c0_1 = arith.constant 0 : index
    %c0_2 = arith.constant 0 : index
    %2 = vector.load %arg2[%c0_0, %c0_1, %c0_2] : memref<4x24x128xf32, #tpu.memory_space<vmem>>, vector<1x24x128xf32>
    %3 = vector.shape_cast %2 : vector<1x24x128xf32> to vector<24x128xf32>
    %c1_3 = arith.constant 1 : index
    %c0_4 = arith.constant 0 : index
    %c0_5 = arith.constant 0 : index
    %4 = vector.load %arg2[%c1_3, %c0_4, %c0_5] : memref<4x24x128xf32, #tpu.memory_space<vmem>>, vector<1x24x128xf32>
    %5 = vector.shape_cast %4 : vector<1x24x128xf32> to vector<24x128xf32>
    %c2 = arith.constant 2 : index
    %c0_6 = arith.constant 0 : index
    %c0_7 = arith.constant 0 : index
    %6 = vector.load %arg2[%c2, %c0_6, %c0_7] : memref<4x24x128xf32, #tpu.memory_space<vmem>>, vector<1x24x128xf32>
    %7 = vector.shape_cast %6 : vector<1x24x128xf32> to vector<24x128xf32>
    %c3 = arith.constant 3 : index
    %c0_8 = arith.constant 0 : index
    %c0_9 = arith.constant 0 : index
    %8 = vector.load %arg2[%c3, %c0_8, %c0_9] : memref<4x24x128xf32, #tpu.memory_space<vmem>>, vector<1x24x128xf32>
    %9 = vector.shape_cast %8 : vector<1x24x128xf32> to vector<24x128xf32>
    %cst = arith.constant -0.000000e+00 : f32
    %10 = vector.broadcast %cst : f32 to vector<24x128xf32>
    %11 = arith.cmpf oge, %3, %10 : vector<24x128xf32>
    %cst_10 = arith.constant -0.000000e+00 : f32
    %12 = vector.broadcast %cst_10 : f32 to vector<24x128xf32>
    %13 = arith.cmpf oge, %5, %12 : vector<24x128xf32>
    %14 = arith.andi %11, %13 : vector<24x128xi1>
    %cst_11 = arith.constant 0.000000e+00 : f32
    %15 = arith.addf %1, %cst_11 : f32
    %16 = vector.broadcast %15 : f32 to vector<24x128xf32>
    %17 = arith.cmpf olt, %7, %16 : vector<24x128xf32>
    %18 = arith.andi %14, %17 : vector<24x128xi1>
    %cst_12 = arith.constant 0.000000e+00 : f32
    %19 = arith.addf %0, %cst_12 : f32
    %20 = vector.broadcast %19 : f32 to vector<24x128xf32>
    %21 = arith.cmpf olt, %9, %20 : vector<24x128xf32>
    %22 = arith.andi %18, %21 : vector<24x128xi1>
    %23 = arith.subf %7, %3 : vector<24x128xf32>
    %cst_13 = arith.constant 1.000000e+00 : f32
    %24 = vector.broadcast %cst_13 : f32 to vector<24x128xf32>
    %25 = arith.addf %23, %24 : vector<24x128xf32>
    %26 = arith.subf %9, %5 : vector<24x128xf32>
    %cst_14 = arith.constant 1.000000e+00 : f32
    %27 = vector.broadcast %cst_14 : f32 to vector<24x128xf32>
    %28 = arith.addf %26, %27 : vector<24x128xf32>
    %29 = arith.mulf %25, %28 : vector<24x128xf32>
    %c0_15 = arith.constant 0 : index
    %30 = memref.load %arg1[%c0_15] : memref<16xf32, #tpu.memory_space<smem>>
    %c1_16 = arith.constant 1 : index
    %31 = memref.load %arg1[%c1_16] : memref<16xf32, #tpu.memory_space<smem>>
    %c2_17 = arith.constant 2 : index
    %32 = memref.load %arg1[%c2_17] : memref<16xf32, #tpu.memory_space<smem>>
    %c3_18 = arith.constant 3 : index
    %33 = memref.load %arg1[%c3_18] : memref<16xf32, #tpu.memory_space<smem>>
    %34 = arith.subf %32, %30 : f32
    %cst_19 = arith.constant 1.000000e+00 : f32
    %35 = arith.addf %34, %cst_19 : f32
    %36 = arith.subf %33, %31 : f32
    %cst_20 = arith.constant 1.000000e+00 : f32
    %37 = arith.addf %36, %cst_20 : f32
    %38 = arith.mulf %35, %37 : f32
    %39 = vector.broadcast %32 : f32 to vector<24x128xf32>
    %40 = arith.minimumf %7, %39 : vector<24x128xf32>
    %41 = vector.broadcast %30 : f32 to vector<24x128xf32>
    %42 = arith.maximumf %3, %41 : vector<24x128xf32>
    %43 = arith.subf %40, %42 : vector<24x128xf32>
    %cst_21 = arith.constant 1.000000e+00 : f32
    %44 = vector.broadcast %cst_21 : f32 to vector<24x128xf32>
    %45 = arith.addf %43, %44 : vector<24x128xf32>
    %46 = vector.broadcast %33 : f32 to vector<24x128xf32>
    %47 = arith.minimumf %9, %46 : vector<24x128xf32>
    %48 = vector.broadcast %31 : f32 to vector<24x128xf32>
    %49 = arith.maximumf %5, %48 : vector<24x128xf32>
    %50 = arith.subf %47, %49 : vector<24x128xf32>
    %cst_22 = arith.constant 1.000000e+00 : f32
    %51 = vector.broadcast %cst_22 : f32 to vector<24x128xf32>
    %52 = arith.addf %50, %51 : vector<24x128xf32>
    %53 = arith.mulf %45, %52 : vector<24x128xf32>
    %cst_23 = arith.constant 0.000000e+00 : f32
    %54 = vector.broadcast %cst_23 : f32 to vector<24x128xf32>
    %55 = arith.cmpf ogt, %45, %54 : vector<24x128xf32>
    %cst_24 = arith.constant 0.000000e+00 : f32
    %56 = vector.broadcast %cst_24 : f32 to vector<24x128xf32>
    %57 = arith.cmpf ogt, %52, %56 : vector<24x128xf32>
    %58 = arith.andi %55, %57 : vector<24x128xi1>
    %59 = vector.broadcast %38 : f32 to vector<24x128xf32>
    %60 = arith.addf %29, %59 : vector<24x128xf32>
    %61 = arith.subf %60, %53 : vector<24x128xf32>
    %cst_25 = arith.constant 1.000000e+00 : f32
    %62 = vector.broadcast %cst_25 : f32 to vector<24x128xf32>
    %63 = arith.select %58, %61, %62 : vector<24x128xi1>, vector<24x128xf32>
    %64 = arith.divf %53, %63 : vector<24x128xf32>
    %cst_26 = arith.constant 0.000000e+00 : f32
    %65 = vector.broadcast %cst_26 : f32 to vector<24x128xf32>
    %66 = arith.select %58, %64, %65 : vector<24x128xi1>, vector<24x128xf32>
    %cst_27 = arith.constant -1.000000e+00 : f32
    %67 = vector.broadcast %cst_27 : f32 to vector<24x128xf32>
    %68 = arith.select %22, %66, %67 : vector<24x128xi1>, vector<24x128xf32>
    %69 = vector.shape_cast %68 : vector<24x128xf32> to vector<1x24x128xf32>
    %cst_28 = arith.constant dense<0xFF800000> : vector<1xf32>
    %70 = vector.multi_reduction <maximumf>, %69, %cst_28 [1, 2] : vector<1x24x128xf32> to vector<1xf32>
    %71 = vector.shape_cast %70 : vector<1xf32> to vector<1x1x1xf32>
    %72 = vector.extract %71[0, 0, 0] : f32 from vector<1x1x1xf32>
    %73 = vector.broadcast %72 : f32 to vector<24x128xf32>
    %74 = arith.cmpf oeq, %66, %73 : vector<24x128xf32>
    %cst_29 = arith.constant 0.000000e+00 : f32
    %75 = vector.broadcast %cst_29 : f32 to vector<24x128xf32>
    %76 = vector.broadcast %30 : f32 to vector<24x128xf32>
    %77 = arith.addf %76, %75 : vector<24x128xf32>
    %cst_30 = arith.constant 0.000000e+00 : f32
    %78 = vector.broadcast %cst_30 : f32 to vector<24x128xf32>
    %79 = vector.broadcast %31 : f32 to vector<24x128xf32>
    %80 = arith.addf %79, %78 : vector<24x128xf32>
    %cst_31 = arith.constant 0.000000e+00 : f32
    %81 = vector.broadcast %cst_31 : f32 to vector<24x128xf32>
    %82 = vector.broadcast %32 : f32 to vector<24x128xf32>
    %83 = arith.addf %82, %81 : vector<24x128xf32>
    %cst_32 = arith.constant 0.000000e+00 : f32
    %84 = vector.broadcast %cst_32 : f32 to vector<24x128xf32>
    %85 = vector.broadcast %33 : f32 to vector<24x128xf32>
    %86 = arith.addf %85, %84 : vector<24x128xf32>
    %c4 = arith.constant 4 : index
    %87 = memref.load %arg1[%c4] : memref<16xf32, #tpu.memory_space<smem>>
    %c5 = arith.constant 5 : index
    %88 = memref.load %arg1[%c5] : memref<16xf32, #tpu.memory_space<smem>>
    %c6 = arith.constant 6 : index
    %89 = memref.load %arg1[%c6] : memref<16xf32, #tpu.memory_space<smem>>
    %c7 = arith.constant 7 : index
    %90 = memref.load %arg1[%c7] : memref<16xf32, #tpu.memory_space<smem>>
    %91 = arith.subf %89, %87 : f32
    %cst_33 = arith.constant 1.000000e+00 : f32
    %92 = arith.addf %91, %cst_33 : f32
    %93 = arith.subf %90, %88 : f32
    %cst_34 = arith.constant 1.000000e+00 : f32
    %94 = arith.addf %93, %cst_34 : f32
    %95 = arith.mulf %92, %94 : f32
    %96 = vector.broadcast %89 : f32 to vector<24x128xf32>
    %97 = arith.minimumf %7, %96 : vector<24x128xf32>
    %98 = vector.broadcast %87 : f32 to vector<24x128xf32>
    %99 = arith.maximumf %3, %98 : vector<24x128xf32>
    %100 = arith.subf %97, %99 : vector<24x128xf32>
    %cst_35 = arith.constant 1.000000e+00 : f32
    %101 = vector.broadcast %cst_35 : f32 to vector<24x128xf32>
    %102 = arith.addf %100, %101 : vector<24x128xf32>
    %103 = vector.broadcast %90 : f32 to vector<24x128xf32>
    %104 = arith.minimumf %9, %103 : vector<24x128xf32>
    %105 = vector.broadcast %88 : f32 to vector<24x128xf32>
    %106 = arith.maximumf %5, %105 : vector<24x128xf32>
    %107 = arith.subf %104, %106 : vector<24x128xf32>
    %cst_36 = arith.constant 1.000000e+00 : f32
    %108 = vector.broadcast %cst_36 : f32 to vector<24x128xf32>
    %109 = arith.addf %107, %108 : vector<24x128xf32>
    %110 = arith.mulf %102, %109 : vector<24x128xf32>
    %cst_37 = arith.constant 0.000000e+00 : f32
    %111 = vector.broadcast %cst_37 : f32 to vector<24x128xf32>
    %112 = arith.cmpf ogt, %102, %111 : vector<24x128xf32>
    %cst_38 = arith.constant 0.000000e+00 : f32
    %113 = vector.broadcast %cst_38 : f32 to vector<24x128xf32>
    %114 = arith.cmpf ogt, %109, %113 : vector<24x128xf32>
    %115 = arith.andi %112, %114 : vector<24x128xi1>
    %116 = vector.broadcast %95 : f32 to vector<24x128xf32>
    %117 = arith.addf %29, %116 : vector<24x128xf32>
    %118 = arith.subf %117, %110 : vector<24x128xf32>
    %cst_39 = arith.constant 1.000000e+00 : f32
    %119 = vector.broadcast %cst_39 : f32 to vector<24x128xf32>
    %120 = arith.select %115, %118, %119 : vector<24x128xi1>, vector<24x128xf32>
    %121 = arith.divf %110, %120 : vector<24x128xf32>
    %cst_40 = arith.constant 0.000000e+00 : f32
    %122 = vector.broadcast %cst_40 : f32 to vector<24x128xf32>
    %123 = arith.select %115, %121, %122 : vector<24x128xi1>, vector<24x128xf32>
    %cst_41 = arith.constant -1.000000e+00 : f32
    %124 = vector.broadcast %cst_41 : f32 to vector<24x128xf32>
    %125 = arith.select %22, %123, %124 : vector<24x128xi1>, vector<24x128xf32>
    %126 = vector.shape_cast %125 : vector<24x128xf32> to vector<1x24x128xf32>
    %cst_42 = arith.constant dense<0xFF800000> : vector<1xf32>
    %127 = vector.multi_reduction <maximumf>, %126, %cst_42 [1, 2] : vector<1x24x128xf32> to vector<1xf32>
    %128 = vector.shape_cast %127 : vector<1xf32> to vector<1x1x1xf32>
    %129 = vector.extract %128[0, 0, 0] : f32 from vector<1x1x1xf32>
    %130 = vector.broadcast %129 : f32 to vector<24x128xf32>
    %131 = arith.cmpf oeq, %123, %130 : vector<24x128xf32>
    %132 = arith.ori %74, %131 : vector<24x128xi1>
    %133 = arith.cmpf ogt, %123, %66 : vector<24x128xf32>
    %134 = arith.select %133, %123, %66 : vector<24x128xi1>, vector<24x128xf32>
    %135 = vector.broadcast %87 : f32 to vector<24x128xf32>
    %136 = arith.select %133, %135, %77 : vector<24x128xi1>, vector<24x128xf32>
    %137 = vector.broadcast %88 : f32 to vector<24x128xf32>
    %138 = arith.select %133, %137, %80 : vector<24x128xi1>, vector<24x128xf32>
    %139 = vector.broadcast %89 : f32 to vector<24x128xf32>
    %140 = arith.select %133, %139, %83 : vector<24x128xi1>, vector<24x128xf32>
    %141 = vector.broadcast %90 : f32 to vector<24x128xf32>
    %142 = arith.select %133, %141, %86 : vector<24x128xi1>, vector<24x128xf32>
    %c8 = arith.constant 8 : index
    %143 = memref.load %arg1[%c8] : memref<16xf32, #tpu.memory_space<smem>>
    %c9 = arith.constant 9 : index
    %144 = memref.load %arg1[%c9] : memref<16xf32, #tpu.memory_space<smem>>
    %c10 = arith.constant 10 : index
    %145 = memref.load %arg1[%c10] : memref<16xf32, #tpu.memory_space<smem>>
    %c11 = arith.constant 11 : index
    %146 = memref.load %arg1[%c11] : memref<16xf32, #tpu.memory_space<smem>>
    %147 = arith.subf %145, %143 : f32
    %cst_43 = arith.constant 1.000000e+00 : f32
    %148 = arith.addf %147, %cst_43 : f32
    %149 = arith.subf %146, %144 : f32
    %cst_44 = arith.constant 1.000000e+00 : f32
    %150 = arith.addf %149, %cst_44 : f32
    %151 = arith.mulf %148, %150 : f32
    %152 = vector.broadcast %145 : f32 to vector<24x128xf32>
    %153 = arith.minimumf %7, %152 : vector<24x128xf32>
    %154 = vector.broadcast %143 : f32 to vector<24x128xf32>
    %155 = arith.maximumf %3, %154 : vector<24x128xf32>
    %156 = arith.subf %153, %155 : vector<24x128xf32>
    %cst_45 = arith.constant 1.000000e+00 : f32
    %157 = vector.broadcast %cst_45 : f32 to vector<24x128xf32>
    %158 = arith.addf %156, %157 : vector<24x128xf32>
    %159 = vector.broadcast %146 : f32 to vector<24x128xf32>
    %160 = arith.minimumf %9, %159 : vector<24x128xf32>
    %161 = vector.broadcast %144 : f32 to vector<24x128xf32>
    %162 = arith.maximumf %5, %161 : vector<24x128xf32>
    %163 = arith.subf %160, %162 : vector<24x128xf32>
    %cst_46 = arith.constant 1.000000e+00 : f32
    %164 = vector.broadcast %cst_46 : f32 to vector<24x128xf32>
    %165 = arith.addf %163, %164 : vector<24x128xf32>
    %166 = arith.mulf %158, %165 : vector<24x128xf32>
    %cst_47 = arith.constant 0.000000e+00 : f32
    %167 = vector.broadcast %cst_47 : f32 to vector<24x128xf32>
    %168 = arith.cmpf ogt, %158, %167 : vector<24x128xf32>
    %cst_48 = arith.constant 0.000000e+00 : f32
    %169 = vector.broadcast %cst_48 : f32 to vector<24x128xf32>
    %170 = arith.cmpf ogt, %165, %169 : vector<24x128xf32>
    %171 = arith.andi %168, %170 : vector<24x128xi1>
    %172 = vector.broadcast %151 : f32 to vector<24x128xf32>
    %173 = arith.addf %29, %172 : vector<24x128xf32>
    %174 = arith.subf %173, %166 : vector<24x128xf32>
    %cst_49 = arith.constant 1.000000e+00 : f32
    %175 = vector.broadcast %cst_49 : f32 to vector<24x128xf32>
    %176 = arith.select %171, %174, %175 : vector<24x128xi1>, vector<24x128xf32>
    %177 = arith.divf %166, %176 : vector<24x128xf32>
    %cst_50 = arith.constant 0.000000e+00 : f32
    %178 = vector.broadcast %cst_50 : f32 to vector<24x128xf32>
    %179 = arith.select %171, %177, %178 : vector<24x128xi1>, vector<24x128xf32>
    %cst_51 = arith.constant -1.000000e+00 : f32
    %180 = vector.broadcast %cst_51 : f32 to vector<24x128xf32>
    %181 = arith.select %22, %179, %180 : vector<24x128xi1>, vector<24x128xf32>
    %182 = vector.shape_cast %181 : vector<24x128xf32> to vector<1x24x128xf32>
    %cst_52 = arith.constant dense<0xFF800000> : vector<1xf32>
    %183 = vector.multi_reduction <maximumf>, %182, %cst_52 [1, 2] : vector<1x24x128xf32> to vector<1xf32>
    %184 = vector.shape_cast %183 : vector<1xf32> to vector<1x1x1xf32>
    %185 = vector.extract %184[0, 0, 0] : f32 from vector<1x1x1xf32>
    %186 = vector.broadcast %185 : f32 to vector<24x128xf32>
    %187 = arith.cmpf oeq, %179, %186 : vector<24x128xf32>
    %188 = arith.ori %132, %187 : vector<24x128xi1>
    %189 = arith.cmpf ogt, %179, %134 : vector<24x128xf32>
    %190 = arith.select %189, %179, %134 : vector<24x128xi1>, vector<24x128xf32>
    %191 = vector.broadcast %143 : f32 to vector<24x128xf32>
    %192 = arith.select %189, %191, %136 : vector<24x128xi1>, vector<24x128xf32>
    %193 = vector.broadcast %144 : f32 to vector<24x128xf32>
    %194 = arith.select %189, %193, %138 : vector<24x128xi1>, vector<24x128xf32>
    %195 = vector.broadcast %145 : f32 to vector<24x128xf32>
    %196 = arith.select %189, %195, %140 : vector<24x128xi1>, vector<24x128xf32>
    %197 = vector.broadcast %146 : f32 to vector<24x128xf32>
    %198 = arith.select %189, %197, %142 : vector<24x128xi1>, vector<24x128xf32>
    %c12 = arith.constant 12 : index
    %199 = memref.load %arg1[%c12] : memref<16xf32, #tpu.memory_space<smem>>
    %c13 = arith.constant 13 : index
    %200 = memref.load %arg1[%c13] : memref<16xf32, #tpu.memory_space<smem>>
    %c14 = arith.constant 14 : index
    %201 = memref.load %arg1[%c14] : memref<16xf32, #tpu.memory_space<smem>>
    %c15 = arith.constant 15 : index
    %202 = memref.load %arg1[%c15] : memref<16xf32, #tpu.memory_space<smem>>
    %203 = arith.subf %201, %199 : f32
    %cst_53 = arith.constant 1.000000e+00 : f32
    %204 = arith.addf %203, %cst_53 : f32
    %205 = arith.subf %202, %200 : f32
    %cst_54 = arith.constant 1.000000e+00 : f32
    %206 = arith.addf %205, %cst_54 : f32
    %207 = arith.mulf %204, %206 : f32
    %208 = vector.broadcast %201 : f32 to vector<24x128xf32>
    %209 = arith.minimumf %7, %208 : vector<24x128xf32>
    %210 = vector.broadcast %199 : f32 to vector<24x128xf32>
    %211 = arith.maximumf %3, %210 : vector<24x128xf32>
    %212 = arith.subf %209, %211 : vector<24x128xf32>
    %cst_55 = arith.constant 1.000000e+00 : f32
    %213 = vector.broadcast %cst_55 : f32 to vector<24x128xf32>
    %214 = arith.addf %212, %213 : vector<24x128xf32>
    %215 = vector.broadcast %202 : f32 to vector<24x128xf32>
    %216 = arith.minimumf %9, %215 : vector<24x128xf32>
    %217 = vector.broadcast %200 : f32 to vector<24x128xf32>
    %218 = arith.maximumf %5, %217 : vector<24x128xf32>
    %219 = arith.subf %216, %218 : vector<24x128xf32>
    %cst_56 = arith.constant 1.000000e+00 : f32
    %220 = vector.broadcast %cst_56 : f32 to vector<24x128xf32>
    %221 = arith.addf %219, %220 : vector<24x128xf32>
    %222 = arith.mulf %214, %221 : vector<24x128xf32>
    %cst_57 = arith.constant 0.000000e+00 : f32
    %223 = vector.broadcast %cst_57 : f32 to vector<24x128xf32>
    %224 = arith.cmpf ogt, %214, %223 : vector<24x128xf32>
    %cst_58 = arith.constant 0.000000e+00 : f32
    %225 = vector.broadcast %cst_58 : f32 to vector<24x128xf32>
    %226 = arith.cmpf ogt, %221, %225 : vector<24x128xf32>
    %227 = arith.andi %224, %226 : vector<24x128xi1>
    %228 = vector.broadcast %207 : f32 to vector<24x128xf32>
    %229 = arith.addf %29, %228 : vector<24x128xf32>
    %230 = arith.subf %229, %222 : vector<24x128xf32>
    %cst_59 = arith.constant 1.000000e+00 : f32
    %231 = vector.broadcast %cst_59 : f32 to vector<24x128xf32>
    %232 = arith.select %227, %230, %231 : vector<24x128xi1>, vector<24x128xf32>
    %233 = arith.divf %222, %232 : vector<24x128xf32>
    %cst_60 = arith.constant 0.000000e+00 : f32
    %234 = vector.broadcast %cst_60 : f32 to vector<24x128xf32>
    %235 = arith.select %227, %233, %234 : vector<24x128xi1>, vector<24x128xf32>
    %cst_61 = arith.constant -1.000000e+00 : f32
    %236 = vector.broadcast %cst_61 : f32 to vector<24x128xf32>
    %237 = arith.select %22, %235, %236 : vector<24x128xi1>, vector<24x128xf32>
    %238 = vector.shape_cast %237 : vector<24x128xf32> to vector<1x24x128xf32>
    %cst_62 = arith.constant dense<0xFF800000> : vector<1xf32>
    %239 = vector.multi_reduction <maximumf>, %238, %cst_62 [1, 2] : vector<1x24x128xf32> to vector<1xf32>
    %240 = vector.shape_cast %239 : vector<1xf32> to vector<1x1x1xf32>
    %241 = vector.extract %240[0, 0, 0] : f32 from vector<1x1x1xf32>
    %242 = vector.broadcast %241 : f32 to vector<24x128xf32>
    %243 = arith.cmpf oeq, %235, %242 : vector<24x128xf32>
    %244 = arith.ori %188, %243 : vector<24x128xi1>
    %245 = arith.cmpf ogt, %235, %190 : vector<24x128xf32>
    %246 = arith.select %245, %235, %190 : vector<24x128xi1>, vector<24x128xf32>
    %247 = vector.broadcast %199 : f32 to vector<24x128xf32>
    %248 = arith.select %245, %247, %192 : vector<24x128xi1>, vector<24x128xf32>
    %249 = vector.broadcast %200 : f32 to vector<24x128xf32>
    %250 = arith.select %245, %249, %194 : vector<24x128xi1>, vector<24x128xf32>
    %251 = vector.broadcast %201 : f32 to vector<24x128xf32>
    %252 = arith.select %245, %251, %196 : vector<24x128xi1>, vector<24x128xf32>
    %253 = vector.broadcast %202 : f32 to vector<24x128xf32>
    %254 = arith.select %245, %253, %198 : vector<24x128xi1>, vector<24x128xf32>
    %255 = arith.andi %244, %22 : vector<24x128xi1>
    %cst_63 = arith.constant -1.000000e+00 : f32
    %256 = vector.broadcast %cst_63 : f32 to vector<24x128xf32>
    %cst_64 = arith.constant 3.000000e-01 : f32
    %257 = vector.broadcast %cst_64 : f32 to vector<24x128xf32>
    %258 = arith.cmpf olt, %246, %257 : vector<24x128xf32>
    %cst_65 = arith.constant 0.000000e+00 : f32
    %259 = vector.broadcast %cst_65 : f32 to vector<24x128xf32>
    %260 = arith.select %258, %259, %256 : vector<24x128xi1>, vector<24x128xf32>
    %cst_66 = arith.constant 1.000000e+00 : f32
    %261 = vector.broadcast %cst_66 : f32 to vector<24x128xf32>
    %262 = arith.select %255, %261, %260 : vector<24x128xi1>, vector<24x128xf32>
    %cst_67 = arith.constant 0.699999988 : f32
    %263 = vector.broadcast %cst_67 : f32 to vector<24x128xf32>
    %264 = arith.cmpf oge, %246, %263 : vector<24x128xf32>
    %cst_68 = arith.constant 1.000000e+00 : f32
    %265 = vector.broadcast %cst_68 : f32 to vector<24x128xf32>
    %266 = arith.select %264, %265, %262 : vector<24x128xi1>, vector<24x128xf32>
    %cst_69 = arith.constant -1.000000e+00 : f32
    %267 = vector.broadcast %cst_69 : f32 to vector<24x128xf32>
    %268 = arith.select %22, %266, %267 : vector<24x128xi1>, vector<24x128xf32>
    %cst_70 = arith.constant 5.000000e-01 : f32
    %269 = vector.broadcast %cst_70 : f32 to vector<24x128xf32>
    %270 = arith.mulf %269, %25 : vector<24x128xf32>
    %271 = arith.addf %3, %270 : vector<24x128xf32>
    %cst_71 = arith.constant 5.000000e-01 : f32
    %272 = vector.broadcast %cst_71 : f32 to vector<24x128xf32>
    %273 = arith.mulf %272, %28 : vector<24x128xf32>
    %274 = arith.addf %5, %273 : vector<24x128xf32>
    %275 = arith.subf %252, %248 : vector<24x128xf32>
    %cst_72 = arith.constant 1.000000e+00 : f32
    %276 = vector.broadcast %cst_72 : f32 to vector<24x128xf32>
    %277 = arith.addf %275, %276 : vector<24x128xf32>
    %278 = arith.subf %254, %250 : vector<24x128xf32>
    %cst_73 = arith.constant 1.000000e+00 : f32
    %279 = vector.broadcast %cst_73 : f32 to vector<24x128xf32>
    %280 = arith.addf %278, %279 : vector<24x128xf32>
    %cst_74 = arith.constant 5.000000e-01 : f32
    %281 = vector.broadcast %cst_74 : f32 to vector<24x128xf32>
    %282 = arith.mulf %281, %277 : vector<24x128xf32>
    %283 = arith.addf %248, %282 : vector<24x128xf32>
    %cst_75 = arith.constant 5.000000e-01 : f32
    %284 = vector.broadcast %cst_75 : f32 to vector<24x128xf32>
    %285 = arith.mulf %284, %280 : vector<24x128xf32>
    %286 = arith.addf %250, %285 : vector<24x128xf32>
    %cst_76 = arith.constant 0.000000e+00 : f32
    %287 = vector.broadcast %cst_76 : f32 to vector<24x128xf32>
    %288 = arith.subf %283, %271 : vector<24x128xf32>
    %289 = arith.divf %288, %25 : vector<24x128xf32>
    %290 = arith.select %22, %289, %287 : vector<24x128xi1>, vector<24x128xf32>
    %c0_77 = arith.constant 0 : index
    %c0_78 = arith.constant 0 : index
    %c0_79 = arith.constant 0 : index
    %291 = vector.load %arg3[%c0_77, %c0_78, %c0_79] : memref<5x24x128xf32, #tpu.memory_space<vmem>>, vector<1x24x128xf32>
    %292 = vector.shape_cast %291 : vector<1x24x128xf32> to vector<24x128xf32>
    %293 = vector.shape_cast %290 : vector<24x128xf32> to vector<1x24x128xf32>
    tpu.vector_store %arg3[%c0_77, %c0_78, %c0_79], %293 {strides = array<i32>} : memref<5x24x128xf32, #tpu.memory_space<vmem>>, vector<1x24x128xf32>,
    %294 = arith.subf %286, %274 : vector<24x128xf32>
    %295 = arith.divf %294, %28 : vector<24x128xf32>
    %296 = arith.select %22, %295, %287 : vector<24x128xi1>, vector<24x128xf32>
    %c1_80 = arith.constant 1 : index
    %c0_81 = arith.constant 0 : index
    %c0_82 = arith.constant 0 : index
    %297 = vector.load %arg3[%c1_80, %c0_81, %c0_82] : memref<5x24x128xf32, #tpu.memory_space<vmem>>, vector<1x24x128xf32>
    %298 = vector.shape_cast %297 : vector<1x24x128xf32> to vector<24x128xf32>
    %299 = vector.shape_cast %296 : vector<24x128xf32> to vector<1x24x128xf32>
    tpu.vector_store %arg3[%c1_80, %c0_81, %c0_82], %299 {strides = array<i32>} : memref<5x24x128xf32, #tpu.memory_space<vmem>>, vector<1x24x128xf32>,
    %300 = arith.divf %277, %25 : vector<24x128xf32>
    %301 = math.log %300 : vector<24x128xf32>
    %302 = arith.select %22, %301, %287 : vector<24x128xi1>, vector<24x128xf32>
    %c2_83 = arith.constant 2 : index
    %c0_84 = arith.constant 0 : index
    %c0_85 = arith.constant 0 : index
    %303 = vector.load %arg3[%c2_83, %c0_84, %c0_85] : memref<5x24x128xf32, #tpu.memory_space<vmem>>, vector<1x24x128xf32>
    %304 = vector.shape_cast %303 : vector<1x24x128xf32> to vector<24x128xf32>
    %305 = vector.shape_cast %302 : vector<24x128xf32> to vector<1x24x128xf32>
    tpu.vector_store %arg3[%c2_83, %c0_84, %c0_85], %305 {strides = array<i32>} : memref<5x24x128xf32, #tpu.memory_space<vmem>>, vector<1x24x128xf32>,
    %306 = arith.divf %280, %28 : vector<24x128xf32>
    %307 = math.log %306 : vector<24x128xf32>
    %308 = arith.select %22, %307, %287 : vector<24x128xi1>, vector<24x128xf32>
    %c3_86 = arith.constant 3 : index
    %c0_87 = arith.constant 0 : index
    %c0_88 = arith.constant 0 : index
    %309 = vector.load %arg3[%c3_86, %c0_87, %c0_88] : memref<5x24x128xf32, #tpu.memory_space<vmem>>, vector<1x24x128xf32>
    %310 = vector.shape_cast %309 : vector<1x24x128xf32> to vector<24x128xf32>
    %311 = vector.shape_cast %308 : vector<24x128xf32> to vector<1x24x128xf32>
    tpu.vector_store %arg3[%c3_86, %c0_87, %c0_88], %311 {strides = array<i32>} : memref<5x24x128xf32, #tpu.memory_space<vmem>>, vector<1x24x128xf32>,
    %c4_89 = arith.constant 4 : index
    %c0_90 = arith.constant 0 : index
    %c0_91 = arith.constant 0 : index
    %312 = vector.load %arg3[%c4_89, %c0_90, %c0_91] : memref<5x24x128xf32, #tpu.memory_space<vmem>>, vector<1x24x128xf32>
    %313 = vector.shape_cast %312 : vector<1x24x128xf32> to vector<24x128xf32>
    %314 = vector.shape_cast %268 : vector<24x128xf32> to vector<1x24x128xf32>
    tpu.vector_store %arg3[%c4_89, %c0_90, %c0_91], %314 {strides = array<i32>} : memref<5x24x128xf32, #tpu.memory_space<vmem>>, vector<1x24x128xf32>,
    return
  }
}

</mosaic_0001>

<llo_original>
// kernel: anchor_target_forward.3
$region0: #{anchor_target_forward.3}
  #allocation0 [shape = 'u32[]', space=smem, size = 0x4, offset = 0x4, fixed_abs, tag = 'smem constant byte address 0x4 - core index']
  #allocation1 [shape = 'u32[144,128]{1,0:T(1,128)}', space=vmem, size = 0x12000, scoped, tag = 'internal scratch']
  %s0 = inlined_call_operand.vmem [shape: f32[3], index: 0, kind: input, shape index: {}]
  %s1 = inlined_call_operand.vmem [shape: f32[16], index: 1, kind: input, shape index: {}]
  %s2 = inlined_call_operand.vmem [shape: f32[4,24,128], index: 2, kind: input, shape index: {}]
  %s3 = inlined_call_operand.vmem [shape: f32[5,24,128], index: 3, kind: output, shape index: {}]
  %s4 = sld [smem:[#allocation0]]
  $region30: #{anchor_target_forward.3} parent=0
    _
  %s6 = ssub.s32 1, %s4
  %s7 = scalar_select 0, %s6, %s4
  $region1: #{anchor_target_forward.3} parent=0
    #allocation2 [shape = 'u8[512]{0}', space=smem, size = 0x200, scoped, tag = 'input window, operand 0, single buffered']
    #allocation3 [shape = 's32[1]{0}', space=sflag, size = 0x4, scoped, tag = 'scoped memory for anchor_target_forward.3']
    #allocation4 [shape = 'u8[512]{0}', space=smem, size = 0x200, scoped, tag = 'input window, operand 1, single buffered']
    #allocation5 [shape = 's32[1]{0}', space=sflag, size = 0x4, scoped, tag = 'scoped memory for anchor_target_forward.3']
    %8 = vsyncpa [#allocation3], 0
    %9 = vsyncpa [#allocation5], 0
    // Predicated region
    $region2: #{anchor_target_forward.3} parent=1 // pred_check
      _
    $region3: #{anchor_target_forward.3} parent=1 // pred_check_branch
      %11 = sbr.rel (0) target = $region5
    $region4: #{anchor_target_forward.3} parent=1 // pred_region
      %s13 = ssub.s32 16, 16
      %14 = vsyncadd [#allocation3], %s13
      %s16 = sshll.u32 %s0, 4
      %s17 = int_to_ptr.vmem [resolvable:$true] %s16
      %19 = dma.vmem_to_smem %s17, 16, [#allocation2], [#allocation3]
    $region5: #{anchor_target_forward.3} parent=1 // pred_fallthru
      _
    // Predicated region
    $region6: #{anchor_target_forward.3} parent=1 // pred_check
      _
    $region7: #{anchor_target_forward.3} parent=1 // pred_check_branch
      %21 = sbr.rel (0) target = $region9
    $region8: #{anchor_target_forward.3} parent=1 // pred_region
      %s23 = ssub.s32 16, 16
      %24 = vsyncadd [#allocation5], %s23
      %s26 = sshll.u32 %s1, 4
      %s27 = int_to_ptr.vmem [resolvable:$true] %s26
      %29 = dma.vmem_to_smem %s27, 16, [#allocation4], [#allocation5]
    $region9: #{anchor_target_forward.3} parent=1 // pred_fallthru
      _
    // Predicated region
    $region10: #{anchor_target_forward.3} parent=1 // pred_check
      _
    $region11: #{anchor_target_forward.3} parent=1 // pred_check_branch
      %31 = sbr.rel (0) target = $region13
    $region12: #{anchor_target_forward.3} parent=1 // pred_region
      _
    $region13: #{anchor_target_forward.3} parent=1 // pred_fallthru
      _
    // Predicated region
    $region14: #{anchor_target_forward.3} parent=1 // pred_check
      _
    $region15: #{anchor_target_forward.3} parent=1 // pred_check_branch
      %33 = sbr.rel (0) target = $region17
    $region16: #{anchor_target_forward.3} parent=1 // pred_region
      %34 = dma.done [#allocation3], 16
    $region17: #{anchor_target_forward.3} parent=1 // pred_fallthru
      _
    // Predicated region
    $region18: #{anchor_target_forward.3} parent=1 // pred_check
      _
    $region19: #{anchor_target_forward.3} parent=1 // pred_check_branch
      %36 = sbr.rel (0) target = $region21
    $region20: #{anchor_target_forward.3} parent=1 // pred_region
      %37 = dma.done [#allocation5], 16
    $region21: #{anchor_target_forward.3} parent=1 // pred_fallthru
      _
    %38 = sfence
    %s39 = sld [smem:[#allocation2]]
    %s40 = sld [smem:[#allocation2 + $0x1]]
    %v41 = vld [vmem:[%s2] sm:$0xff]
    %v42 = vld [vmem:[%s2 + $0x8] sm:$0xff]
    %v43 = vld [vmem:[%s2 + $0x10] sm:$0xff]
    %s44 = scalar_lea.vmem %s2, 24
    %v45 = vld [vmem:[%s44] sm:$0xff]
    %v46 = vld [vmem:[%s44 + $0x8] sm:$0xff]
    %v47 = vld [vmem:[%s44 + $0x10] sm:$0xff]
    %s48 = scalar_lea.vmem %s2, 48
    %v49 = vld [vmem:[%s48] sm:$0xff]
    %v50 = vld [vmem:[%s48 + $0x8] sm:$0xff]
    %v51 = vld [vmem:[%s48 + $0x10] sm:$0xff]
    %s52 = scalar_lea.vmem %s2, 72
    %v53 = vld [vmem:[%s52] sm:$0xff]
    %v54 = vld [vmem:[%s52 + $0x8] sm:$0xff]
    %v55 = vld [vmem:[%s52 + $0x10] sm:$0xff]
    %vm56 = vcmp.ge.f32.partialorder %v41, -0.0
    %vm57 = vcmp.ge.f32.partialorder %v42, -0.0
    %vm58 = vcmp.ge.f32.partialorder %v43, -0.0
    %vm59 = vcmp.ge.f32.partialorder %v45, -0.0
    %vm60 = vcmp.ge.f32.partialorder %v46, -0.0
    %vm61 = vcmp.ge.f32.partialorder %v47, -0.0
    %vm62 = vmand %vm56, %vm59
    %vm63 = vmand %vm57, %vm60
    %vm64 = vmand %vm58, %vm61
    %s65 = sadd.f32 %s40, 0.0
    %v66 = vstv %s65
    %vm67 = vcmp.lt.f32.partialorder %v49, %v66
    %vm68 = vcmp.lt.f32.partialorder %v50, %v66
    %vm69 = vcmp.lt.f32.partialorder %v51, %v66
    %vm70 = vmand %vm62, %vm67
    %vm71 = vmand %vm63, %vm68
    %vm72 = vmand %vm64, %vm69
    %s73 = sadd.f32 %s39, 0.0
    %v74 = vstv %s73
    %vm75 = vcmp.lt.f32.partialorder %v53, %v74
    %vm76 = vcmp.lt.f32.partialorder %v54, %v74
    %vm77 = vcmp.lt.f32.partialorder %v55, %v74
    %vm78 = vmand %vm70, %vm75
    %vm79 = vmand %vm71, %vm76
    %vm80 = vmand %vm72, %vm77
    %v81 = vsub.f32 %v49, %v41
    %v82 = vsub.f32 %v50, %v42
    %v83 = vsub.f32 %v51, %v43
    %v84 = vadd.f32 %v81, 1.0
    %v85 = vadd.f32 %v82, 1.0
    %v86 = vadd.f32 %v83, 1.0
    %v87 = vsub.f32 %v53, %v45
    %v88 = vsub.f32 %v54, %v46
    %v89 = vsub.f32 %v55, %v47
    %v90 = vadd.f32 %v87, 1.0
    %v91 = vadd.f32 %v88, 1.0
    %v92 = vadd.f32 %v89, 1.0
    %v93 = vmul.f32 %v84, %v90
    %v94 = vmul.f32 %v85, %v91
    %v95 = vmul.f32 %v86, %v92
    %s96 = sld [smem:[#allocation4]]
    %s97 = sld [smem:[#allocation4 + $0x1]]
    %s98 = sld [smem:[#allocation4 + $0x2]]
    %s99 = sld [smem:[#allocation4 + $0x3]]
    %s100 = ssub.f32 %s98, %s96
    %s101 = sadd.f32 %s100, 1.0
    %s102 = ssub.f32 %s99, %s97
    %s103 = sadd.f32 %s102, 1.0
    %s104 = smul.f32 %s101, %s103
    %v105 = vstv %s98
    %v106 = vmin.f32 %v49, %v105
    %v107 = vmin.f32 %v50, %v105
    %v108 = vmin.f32 %v51, %v105
    %v109 = vstv %s96
    %v110 = vmax.f32 %v41, %v109
    %v111 = vmax.f32 %v42, %v109
    %v112 = vmax.f32 %v43, %v109
    %v113 = vsub.f32 %v106, %v110
    %v114 = vsub.f32 %v107, %v111
    %v115 = vsub.f32 %v108, %v112
    %v116 = vadd.f32 %v113, 1.0
    %v117 = vadd.f32 %v114, 1.0
    %v118 = vadd.f32 %v115, 1.0
    %v119 = vstv %s99
    %v120 = vmin.f32 %v53, %v119
    %v121 = vmin.f32 %v54, %v119
    %v122 = vmin.f32 %v55, %v119
    %v123 = vstv %s97
    %v124 = vmax.f32 %v45, %v123
    %v125 = vmax.f32 %v46, %v123
    %v126 = vmax.f32 %v47, %v123
    %v127 = vsub.f32 %v120, %v124
    %v128 = vsub.f32 %v121, %v125
    %v129 = vsub.f32 %v122, %v126
    %v130 = vadd.f32 %v127, 1.0
    %v131 = vadd.f32 %v128, 1.0
    %v132 = vadd.f32 %v129, 1.0
    %v133 = vmul.f32 %v116, %v130
    %v134 = vmul.f32 %v117, %v131
    %v135 = vmul.f32 %v118, %v132
    %vm136 = vcmp.gt.f32.partialorder %v116, 0.0
    %vm137 = vcmp.gt.f32.partialorder %v117, 0.0
    %vm138 = vcmp.gt.f32.partialorder %v118, 0.0
    %vm139 = vcmp.gt.f32.partialorder %v130, 0.0
    %vm140 = vcmp.gt.f32.partialorder %v131, 0.0
    %vm141 = vcmp.gt.f32.partialorder %v132, 0.0
    %vm142 = vmand %vm136, %vm139
    %vm143 = vmand %vm137, %vm140
    %vm144 = vmand %vm138, %vm141
    %v145 = vstv %s104
    %v146 = vadd.f32 %v93, %v145
    %v147 = vadd.f32 %v94, %v145
    %v148 = vadd.f32 %v95, %v145
    %v149 = vsub.f32 %v146, %v133
    %v150 = vsub.f32 %v147, %v134
    %v151 = vsub.f32 %v148, %v135
    %v152 = vsel %vm142, %v149, 1.0
    %v153 = vsel %vm143, %v150, 1.0
    %v154 = vsel %vm144, %v151, 1.0
    %v155 = vrcp.pop %v152
    %v156 = vmul.f32 %v133, %v155
    %v157 = vrcp.pop %v153
    %v158 = vmul.f32 %v134, %v157
    %v159 = vrcp.pop %v154
    %v160 = vmul.f32 %v135, %v159
    %v161 = vsel %vm142, %v156, 0.0
    %v162 = vsel %vm143, %v158, 0.0
    %v163 = vsel %vm144, %v160, 0.0
    %v164 = vsel %vm78, %v161, -1.0
    %v165 = vsel %vm79, %v162, -1.0
    %v166 = vsel %vm80, %v163, -1.0
    %v167 = vmax.f32 %v164, %v165
    %v168 = vmax.f32 %v167, %v166
    %169 = vmax.xlane.f32.xlu0 %v168
    %v170 = vpop.xlane.xlu0 %169
    %v171 = vrot.slane %v170, 4
    %v172 = vmax.f32 %v170, %v171
    %v173 = vrot.slane %v172, 2
    %v174 = vmax.f32 %v172, %v173
    %v175 = vrot.slane %v174, 1
    %v176 = vmax.f32 %v174, %v175
    %s177 = vtos %v176
    %v178 = vstv %s177
    %vm179 = vcmp.eq.f32.partialorder %v161, %v178
    %vm180 = vcmp.eq.f32.partialorder %v162, %v178
    %vm181 = vcmp.eq.f32.partialorder %v163, %v178
    %v182 = vadd.f32 %v109, 0.0
    %v183 = vadd.f32 %v123, 0.0
    %v184 = vadd.f32 %v105, 0.0
    %v185 = vadd.f32 %v119, 0.0
    %s186 = sld [smem:[#allocation4 + $0x4]]
    %s187 = sld [smem:[#allocation4 + $0x5]]
    %s188 = sld [smem:[#allocation4 + $0x6]]
    %s189 = sld [smem:[#allocation4 + $0x7]]
    %s190 = ssub.f32 %s188, %s186
    %s191 = sadd.f32 %s190, 1.0
    %s192 = ssub.f32 %s189, %s187
    %s193 = sadd.f32 %s192, 1.0
    %s194 = smul.f32 %s191, %s193
    %v195 = vstv %s188
    %v196 = vmin.f32 %v49, %v195
    %v197 = vmin.f32 %v50, %v195
    %v198 = vmin.f32 %v51, %v195
    %v199 = vstv %s186
    %v200 = vmax.f32 %v41, %v199
    %v201 = vmax.f32 %v42, %v199
    %v202 = vmax.f32 %v43, %v199
    %v203 = vsub.f32 %v196, %v200
    %v204 = vsub.f32 %v197, %v201
    %v205 = vsub.f32 %v198, %v202
    %v206 = vadd.f32 %v203, 1.0
    %v207 = vadd.f32 %v204, 1.0
    %v208 = vadd.f32 %v205, 1.0
    %v209 = vstv %s189
    %v210 = vmin.f32 %v53, %v209
    %v211 = vmin.f32 %v54, %v209
    %v212 = vmin.f32 %v55, %v209
    %v213 = vstv %s187
    %v214 = vmax.f32 %v45, %v213
    %v215 = vmax.f32 %v46, %v213
    %v216 = vmax.f32 %v47, %v213
    %v217 = vsub.f32 %v210, %v214
    %v218 = vsub.f32 %v211, %v215
    %v219 = vsub.f32 %v212, %v216
    %v220 = vadd.f32 %v217, 1.0
    %v221 = vadd.f32 %v218, 1.0
    %v222 = vadd.f32 %v219, 1.0
    %v223 = vmul.f32 %v206, %v220
    %v224 = vmul.f32 %v207, %v221
    %v225 = vmul.f32 %v208, %v222
    %vm226 = vcmp.gt.f32.partialorder %v206, 0.0
    %vm227 = vcmp.gt.f32.partialorder %v207, 0.0
    %vm228 = vcmp.gt.f32.partialorder %v208, 0.0
    %vm229 = vcmp.gt.f32.partialorder %v220, 0.0
    %vm230 = vcmp.gt.f32.partialorder %v221, 0.0
    %vm231 = vcmp.gt.f32.partialorder %v222, 0.0
    %vm232 = vmand %vm226, %vm229
    %vm233 = vmand %vm227, %vm230
    %vm234 = vmand %vm228, %vm231
    %v235 = vstv %s194
    %v236 = vadd.f32 %v93, %v235
    %v237 = vadd.f32 %v94, %v235
    %v238 = vadd.f32 %v95, %v235
    %v239 = vsub.f32 %v236, %v223
    %v240 = vsub.f32 %v237, %v224
    %v241 = vsub.f32 %v238, %v225
    %v242 = vsel %vm232, %v239, 1.0
    %v243 = vsel %vm233, %v240, 1.0
    %v244 = vsel %vm234, %v241, 1.0
    %v245 = vrcp.pop %v242
    %v246 = vmul.f32 %v223, %v245
    %v247 = vrcp.pop %v243
    %v248 = vmul.f32 %v224, %v247
    %v249 = vrcp.pop %v244
    %v250 = vmul.f32 %v225, %v249
    %v251 = vsel %vm232, %v246, 0.0
    %v252 = vsel %vm233, %v248, 0.0
    %v253 = vsel %vm234, %v250, 0.0
    %v254 = vsel %vm78, %v251, -1.0
    %v255 = vsel %vm79, %v252, -1.0
    %v256 = vsel %vm80, %v253, -1.0
    %v257 = vmax.f32 %v254, %v255
    %v258 = vmax.f32 %v257, %v256
    %259 = vmax.xlane.f32.xlu0 %v258
    %v260 = vpop.xlane.xlu0 %259
    %v261 = vrot.slane %v260, 4
    %v262 = vmax.f32 %v260, %v261
    %v263 = vrot.slane %v262, 2
    %v264 = vmax.f32 %v262, %v263
    %v265 = vrot.slane %v264, 1
    %v266 = vmax.f32 %v264, %v265
    %s267 = vtos %v266
    %v268 = vstv %s267
    %vm269 = vcmp.eq.f32.partialorder %v251, %v268
    %vm270 = vcmp.eq.f32.partialorder %v252, %v268
    %vm271 = vcmp.eq.f32.partialorder %v253, %v268
    %vm272 = vmor %vm179, %vm269
    %vm273 = vmor %vm180, %vm270
    %vm274 = vmor %vm181, %vm271
    %vm275 = vcmp.gt.f32.partialorder %v251, %v161
    %vm276 = vcmp.gt.f32.partialorder %v252, %v162
    %vm277 = vcmp.gt.f32.partialorder %v253, %v163
    %v278 = vsel %vm275, %v251, %v161
    %v279 = vsel %vm276, %v252, %v162
    %v280 = vsel %vm277, %v253, %v163
    %v281 = vsel %vm275, %v199, %v182
    %v282 = vsel %vm276, %v199, %v182
    %v283 = vsel %vm277, %v199, %v182
    %v284 = vsel %vm275, %v213, %v183
    %v285 = vsel %vm276, %v213, %v183
    %v286 = vsel %vm277, %v213, %v183
    %v287 = vsel %vm275, %v195, %v184
    %v288 = vsel %vm276, %v195, %v184
    %v289 = vsel %vm277, %v195, %v184
    %v290 = vsel %vm275, %v209, %v185
    %v291 = vsel %vm276, %v209, %v185
    %v292 = vsel %vm277, %v209, %v185
    %s293 = sld [smem:[#allocation4 + $0x8]]
    %s294 = sld [smem:[#allocation4 + $0x9]]
    %s295 = sld [smem:[#allocation4 + $0xa]]
    %s296 = sld [smem:[#allocation4 + $0xb]]
    %s297 = ssub.f32 %s295, %s293
    %s298 = sadd.f32 %s297, 1.0
    %s299 = ssub.f32 %s296, %s294
    %s300 = sadd.f32 %s299, 1.0
    %s301 = smul.f32 %s298, %s300
    %v302 = vstv %s295
    %v303 = vmin.f32 %v49, %v302
    %v304 = vmin.f32 %v50, %v302
    %v305 = vmin.f32 %v51, %v302
    %v306 = vstv %s293
    %v307 = vmax.f32 %v41, %v306
    %v308 = vmax.f32 %v42, %v306
    %v309 = vmax.f32 %v43, %v306
    %v310 = vsub.f32 %v303, %v307
    %v311 = vsub.f32 %v304, %v308
    %v312 = vsub.f32 %v305, %v309
    %v313 = vadd.f32 %v310, 1.0
    %v314 = vadd.f32 %v311, 1.0
    %v315 = vadd.f32 %v312, 1.0
    %v316 = vstv %s296
    %v317 = vmin.f32 %v53, %v316
    %v318 = vmin.f32 %v54, %v316
    %v319 = vmin.f32 %v55, %v316
    %v320 = vstv %s294
    %v321 = vmax.f32 %v45, %v320
    %v322 = vmax.f32 %v46, %v320
    %v323 = vmax.f32 %v47, %v320
    %v324 = vsub.f32 %v317, %v321
    %v325 = vsub.f32 %v318, %v322
    %v326 = vsub.f32 %v319, %v323
    %v327 = vadd.f32 %v324, 1.0
    %v328 = vadd.f32 %v325, 1.0
    %v329 = vadd.f32 %v326, 1.0
    %v330 = vmul.f32 %v313, %v327
    %v331 = vmul.f32 %v314, %v328
    %v332 = vmul.f32 %v315, %v329
    %vm333 = vcmp.gt.f32.partialorder %v313, 0.0
    %vm334 = vcmp.gt.f32.partialorder %v314, 0.0
    %vm335 = vcmp.gt.f32.partialorder %v315, 0.0
    %vm336 = vcmp.gt.f32.partialorder %v327, 0.0
    %vm337 = vcmp.gt.f32.partialorder %v328, 0.0
    %vm338 = vcmp.gt.f32.partialorder %v329, 0.0
    %vm339 = vmand %vm333, %vm336
    %vm340 = vmand %vm334, %vm337
    %vm341 = vmand %vm335, %vm338
    %v342 = vstv %s301
    %v343 = vadd.f32 %v93, %v342
    %v344 = vadd.f32 %v94, %v342
    %v345 = vadd.f32 %v95, %v342
    %v346 = vsub.f32 %v343, %v330
    %v347 = vsub.f32 %v344, %v331
    %v348 = vsub.f32 %v345, %v332
    %v349 = vsel %vm339, %v346, 1.0
    %v350 = vsel %vm340, %v347, 1.0
    %v351 = vsel %vm341, %v348, 1.0
    %v352 = vrcp.pop %v349
    %v353 = vmul.f32 %v330, %v352
    %v354 = vrcp.pop %v350
    %v355 = vmul.f32 %v331, %v354
    %v356 = vrcp.pop %v351
    %v357 = vmul.f32 %v332, %v356
    %v358 = vsel %vm339, %v353, 0.0
    %v359 = vsel %vm340, %v355, 0.0
    %v360 = vsel %vm341, %v357, 0.0
    %v361 = vsel %vm78, %v358, -1.0
    %v362 = vsel %vm79, %v359, -1.0
    %v363 = vsel %vm80, %v360, -1.0
    %v364 = vmax.f32 %v361, %v362
    %v365 = vmax.f32 %v364, %v363
    %366 = vmax.xlane.f32.xlu0 %v365
    %v367 = vpop.xlane.xlu0 %366
    %v368 = vrot.slane %v367, 4
    %v369 = vmax.f32 %v367, %v368
    %v370 = vrot.slane %v369, 2
    %v371 = vmax.f32 %v369, %v370
    %v372 = vrot.slane %v371, 1
    %v373 = vmax.f32 %v371, %v372
    %s374 = vtos %v373
    %v375 = vstv %s374
    %vm376 = vcmp.eq.f32.partialorder %v358, %v375
    %vm377 = vcmp.eq.f32.partialorder %v359, %v375
    %vm378 = vcmp.eq.f32.partialorder %v360, %v375
    %vm379 = vmor %vm272, %vm376
    %vm380 = vmor %vm273, %vm377
    %vm381 = vmor %vm274, %vm378
    %vm382 = vcmp.gt.f32.partialorder %v358, %v278
    %vm383 = vcmp.gt.f32.partialorder %v359, %v279
    %vm384 = vcmp.gt.f32.partialorder %v360, %v280
    %v385 = vsel %vm382, %v358, %v278
    %v386 = vsel %vm383, %v359, %v279
    %v387 = vsel %vm384, %v360, %v280
    %v388 = vsel %vm382, %v306, %v281
    %v389 = vsel %vm383, %v306, %v282
    %v390 = vsel %vm384, %v306, %v283
    %v391 = vsel %vm382, %v320, %v284
    %v392 = vsel %vm383, %v320, %v285
    %v393 = vsel %vm384, %v320, %v286
    %v394 = vsel %vm382, %v302, %v287
    %v395 = vsel %vm383, %v302, %v288
    %v396 = vsel %vm384, %v302, %v289
    %v397 = vsel %vm382, %v316, %v290
    %v398 = vsel %vm383, %v316, %v291
    %v399 = vsel %vm384, %v316, %v292
    %s400 = sld [smem:[#allocation4 + $0xc]]
    %s401 = sld [smem:[#allocation4 + $0xd]]
    %s402 = sld [smem:[#allocation4 + $0xe]]
    %s403 = sld [smem:[#allocation4 + $0xf]]
    %s404 = ssub.f32 %s402, %s400
    %s405 = sadd.f32 %s404, 1.0
    %s406 = ssub.f32 %s403, %s401
    %s407 = sadd.f32 %s406, 1.0
    %s408 = smul.f32 %s405, %s407
    %v409 = vstv %s402
    %v410 = vmin.f32 %v49, %v409
    %v411 = vmin.f32 %v50, %v409
    %v412 = vmin.f32 %v51, %v409
    %v413 = vstv %s400
    %v414 = vmax.f32 %v41, %v413
    %v415 = vmax.f32 %v42, %v413
    %v416 = vmax.f32 %v43, %v413
    %v417 = vsub.f32 %v410, %v414
    %v418 = vsub.f32 %v411, %v415
    %v419 = vsub.f32 %v412, %v416
    %v420 = vadd.f32 %v417, 1.0
    %v421 = vadd.f32 %v418, 1.0
    %v422 = vadd.f32 %v419, 1.0
    %v423 = vstv %s403
    %v424 = vmin.f32 %v53, %v423
    %v425 = vmin.f32 %v54, %v423
    %v426 = vmin.f32 %v55, %v423
    %v427 = vstv %s401
    %v428 = vmax.f32 %v45, %v427
    %v429 = vmax.f32 %v46, %v427
    %v430 = vmax.f32 %v47, %v427
    %v431 = vsub.f32 %v424, %v428
    %v432 = vsub.f32 %v425, %v429
    %v433 = vsub.f32 %v426, %v430
    %v434 = vadd.f32 %v431, 1.0
    %v435 = vadd.f32 %v432, 1.0
    %v436 = vadd.f32 %v433, 1.0
    %v437 = vmul.f32 %v420, %v434
    %v438 = vmul.f32 %v421, %v435
    %v439 = vmul.f32 %v422, %v436
    %vm440 = vcmp.gt.f32.partialorder %v420, 0.0
    %vm441 = vcmp.gt.f32.partialorder %v421, 0.0
    %vm442 = vcmp.gt.f32.partialorder %v422, 0.0
    %vm443 = vcmp.gt.f32.partialorder %v434, 0.0
    %vm444 = vcmp.gt.f32.partialorder %v435, 0.0
    %vm445 = vcmp.gt.f32.partialorder %v436, 0.0
    %vm446 = vmand %vm440, %vm443
    %vm447 = vmand %vm441, %vm444
    %vm448 = vmand %vm442, %vm445
    %v449 = vstv %s408
    %v450 = vadd.f32 %v93, %v449
    %v451 = vadd.f32 %v94, %v449
    %v452 = vadd.f32 %v95, %v449
    %v453 = vsub.f32 %v450, %v437
    %v454 = vsub.f32 %v451, %v438
    %v455 = vsub.f32 %v452, %v439
    %v456 = vsel %vm446, %v453, 1.0
    %v457 = vsel %vm447, %v454, 1.0
    %v458 = vsel %vm448, %v455, 1.0
    %v459 = vrcp.pop %v456
    %v460 = vmul.f32 %v437, %v459
    %v461 = vrcp.pop %v457
    %v462 = vmul.f32 %v438, %v461
    %v463 = vrcp.pop %v458
    %v464 = vmul.f32 %v439, %v463
    %v465 = vsel %vm446, %v460, 0.0
    %v466 = vsel %vm447, %v462, 0.0
    %v467 = vsel %vm448, %v464, 0.0
    %v468 = vsel %vm78, %v465, -1.0
    %v469 = vsel %vm79, %v466, -1.0
    %v470 = vsel %vm80, %v467, -1.0
    %v471 = vmax.f32 %v468, %v469
    %v472 = vmax.f32 %v471, %v470
    %473 = vmax.xlane.f32.xlu0 %v472
    %v474 = vpop.xlane.xlu0 %473
    %v475 = vrot.slane %v474, 4
    %v476 = vmax.f32 %v474, %v475
    %v477 = vrot.slane %v476, 2
    %v478 = vmax.f32 %v476, %v477
    %v479 = vrot.slane %v478, 1
    %v480 = vmax.f32 %v478, %v479
    %s481 = vtos %v480
    %v482 = vstv %s481
    %vm483 = vcmp.eq.f32.partialorder %v465, %v482
    %vm484 = vcmp.eq.f32.partialorder %v466, %v482
    %vm485 = vcmp.eq.f32.partialorder %v467, %v482
    %vm486 = vmor %vm379, %vm483
    %vm487 = vmor %vm380, %vm484
    %vm488 = vmor %vm381, %vm485
    %vm489 = vcmp.gt.f32.partialorder %v465, %v385
    %vm490 = vcmp.gt.f32.partialorder %v466, %v386
    %vm491 = vcmp.gt.f32.partialorder %v467, %v387
    %v492 = vsel %vm489, %v465, %v385
    %v493 = vsel %vm490, %v466, %v386
    %v494 = vsel %vm491, %v467, %v387
    %v495 = vsel %vm489, %v413, %v388
    %v496 = vsel %vm490, %v413, %v389
    %v497 = vsel %vm491, %v413, %v390
    %v498 = vsel %vm489, %v427, %v391
    %v499 = vsel %vm490, %v427, %v392
    %v500 = vsel %vm491, %v427, %v393
    %v501 = vsel %vm489, %v409, %v394
    %v502 = vsel %vm490, %v409, %v395
    %v503 = vsel %vm491, %v409, %v396
    %v504 = vsel %vm489, %v423, %v397
    %v505 = vsel %vm490, %v423, %v398
    %v506 = vsel %vm491, %v423, %v399
    %vm507 = vmand %vm486, %vm78
    %vm508 = vmand %vm487, %vm79
    %vm509 = vmand %vm488, %vm80
    %vm510 = vcmp.lt.f32.partialorder %v492, 0.3
    %vm511 = vcmp.lt.f32.partialorder %v493, 0.3
    %vm512 = vcmp.lt.f32.partialorder %v494, 0.3
    %v513 = vsel %vm510, 0.0, -1.0
    %v514 = vsel %vm511, 0.0, -1.0
    %v515 = vsel %vm512, 0.0, -1.0
    %v516 = vsel %vm507, 1.0, %v513
    %v517 = vsel %vm508, 1.0, %v514
    %v518 = vsel %vm509, 1.0, %v515
    %vm519 = vcmp.ge.f32.partialorder %v492, 0.7
    %vm520 = vcmp.ge.f32.partialorder %v493, 0.7
    %vm521 = vcmp.ge.f32.partialorder %v494, 0.7
    %v522 = vsel %vm519, 1.0, %v516
    %v523 = vsel %vm520, 1.0, %v517
    %v524 = vsel %vm521, 1.0, %v518
    %v525 = vsel %vm78, %v522, -1.0
    %v526 = vsel %vm79, %v523, -1.0
    %v527 = vsel %vm80, %v524, -1.0
    %v528 = vmul.f32 %v84, 0.5
    %v529 = vmul.f32 %v85, 0.5
    %v530 = vmul.f32 %v86, 0.5
    %v531 = vadd.f32 %v41, %v528
    %v532 = vadd.f32 %v42, %v529
    %v533 = vadd.f32 %v43, %v530
    %v534 = vmul.f32 %v90, 0.5
    %v535 = vmul.f32 %v91, 0.5
    %v536 = vmul.f32 %v92, 0.5
    %v537 = vadd.f32 %v45, %v534
    %v538 = vadd.f32 %v46, %v535
    %v539 = vadd.f32 %v47, %v536
    %v540 = vsub.f32 %v501, %v495
    %v541 = vsub.f32 %v502, %v496
    %v542 = vsub.f32 %v503, %v497
    %v543 = vadd.f32 %v540, 1.0
    %v544 = vadd.f32 %v541, 1.0
    %v545 = vadd.f32 %v542, 1.0
    %v546 = vsub.f32 %v504, %v498
    %v547 = vsub.f32 %v505, %v499
    %v548 = vsub.f32 %v506, %v500
    %v549 = vadd.f32 %v546, 1.0
    %v550 = vadd.f32 %v547, 1.0
    %v551 = vadd.f32 %v548, 1.0
    %v552 = vmul.f32 %v543, 0.5
    %v553 = vmul.f32 %v544, 0.5
    %v554 = vmul.f32 %v545, 0.5
    %v555 = vadd.f32 %v495, %v552
    %v556 = vadd.f32 %v496, %v553
    %v557 = vadd.f32 %v497, %v554
    %v558 = vmul.f32 %v549, 0.5
    %v559 = vmul.f32 %v550, 0.5
    %v560 = vmul.f32 %v551, 0.5
    %v561 = vadd.f32 %v498, %v558
    %v562 = vadd.f32 %v499, %v559
    %v563 = vadd.f32 %v500, %v560
    %v564 = vsub.f32 %v555, %v531
    %v565 = vsub.f32 %v556, %v532
    %v566 = vsub.f32 %v557, %v533
    %v567 = vrcp.pop %v84
    %v568 = vmul.f32 %v564, %v567
    %v569 = vrcp.pop %v85
    %v570 = vmul.f32 %v565, %v569
    %v571 = vrcp.pop %v86
    %v572 = vmul.f32 %v566, %v571
    %v573 = vsel %vm78, %v568, 0.0
    %v574 = vsel %vm79, %v570, 0.0
    %v575 = vsel %vm80, %v572, 0.0
    %576 = vst [vmem:[%s3] sm:$0xff] %v573
    %577 = vst [vmem:[%s3 + $0x8] sm:$0xff] %v574
    %578 = vst [vmem:[%s3 + $0x10] sm:$0xff] %v575
    %v579 = vsub.f32 %v561, %v537
    %v580 = vsub.f32 %v562, %v538
    %v581 = vsub.f32 %v563, %v539
    %v582 = vrcp.pop %v90
    %v583 = vmul.f32 %v579, %v582
    %v584 = vrcp.pop %v91
    %v585 = vmul.f32 %v580, %v584
    %v586 = vrcp.pop %v92
    %v587 = vmul.f32 %v581, %v586
    %v588 = vsel %vm78, %v583, 0.0
    %v589 = vsel %vm79, %v585, 0.0
    %v590 = vsel %vm80, %v587, 0.0
    %s591 = scalar_lea.vmem %s3, 24
    %592 = vst [vmem:[%s591] sm:$0xff] %v588
    %593 = vst [vmem:[%s591 + $0x8] sm:$0xff] %v589
    %594 = vst [vmem:[%s591 + $0x10] sm:$0xff] %v590
    %v595 = vmul.f32 %v543, %v567
    %v596 = vmul.f32 %v544, %v569
    %v597 = vmul.f32 %v545, %v571
    %v598 = vlog2.pop %v595
    %v599 = vmul.f32 %v598, 0.6931472
    %v600 = vlog2.pop %v596
    %v601 = vmul.f32 %v600, 0.6931472
    %v602 = vlog2.pop %v597
    %v603 = vmul.f32 %v602, 0.6931472
    %v604 = vsel %vm78, %v599, 0.0
    %v605 = vsel %vm79, %v601, 0.0
    %v606 = vsel %vm80, %v603, 0.0
    %s607 = scalar_lea.vmem %s3, 48
    %608 = vst [vmem:[%s607] sm:$0xff] %v604
    %609 = vst [vmem:[%s607 + $0x8] sm:$0xff] %v605
    %610 = vst [vmem:[%s607 + $0x10] sm:$0xff] %v606
    %v611 = vmul.f32 %v549, %v582
    %v612 = vmul.f32 %v550, %v584
    %v613 = vmul.f32 %v551, %v586
    %v614 = vlog2.pop %v611
    %v615 = vmul.f32 %v614, 0.6931472
    %v616 = vlog2.pop %v612
    %v617 = vmul.f32 %v616, 0.6931472
    %v618 = vlog2.pop %v613
    %v619 = vmul.f32 %v618, 0.6931472
    %v620 = vsel %vm78, %v615, 0.0
    %v621 = vsel %vm79, %v617, 0.0
    %v622 = vsel %vm80, %v619, 0.0
    %s623 = scalar_lea.vmem %s3, 72
    %624 = vst [vmem:[%s623] sm:$0xff] %v620
    %625 = vst [vmem:[%s623 + $0x8] sm:$0xff] %v621
    %626 = vst [vmem:[%s623 + $0x10] sm:$0xff] %v622
    %s627 = scalar_lea.vmem %s3, 96
    %628 = vst [vmem:[%s627] sm:$0xff] %v525
    %629 = vst [vmem:[%s627 + $0x8] sm:$0xff] %v526
    %630 = vst [vmem:[%s627 + $0x10] sm:$0xff] %v527
    // Predicated region
    $region22: #{anchor_target_forward.3} parent=1 // pred_check
      _
    $region23: #{anchor_target_forward.3} parent=1 // pred_check_branch
      %632 = sbr.rel (0) target = $region25
    $region24: #{anchor_target_forward.3} parent=1 // pred_region
      _
    $region25: #{anchor_target_forward.3} parent=1 // pred_fallthru
      _
    // Predicated region
    $region26: #{anchor_target_forward.3} parent=1 // pred_check
      _
    $region27: #{anchor_target_forward.3} parent=1 // pred_check_branch
      %634 = sbr.rel (0) target = $region29
    $region28: #{anchor_target_forward.3} parent=1 // pred_region
      _
    $region29: #{anchor_target_forward.3} parent=1 // pred_fallthru
      _
    %635 = vsyncpa [#allocation3], 1
    %636 = vsyncpa [#allocation5], 1

// kernel: mul.19
$region0: #{mul.19}
  #allocation0 [shape = 's32[1]{0}', space=sflag, size = 0x4, scoped, tag = 'scoped memory for mul.19']
  %s0 = inlined_call_operand.vmem [shape: f32[9,16,16], index: 0, kind: input, shape index: {}]
  %s1 = inlined_call_operand.vmem [shape: f32[9,4,16,16], index: 1, kind: output, shape index: {}]
  // Predicated region
  $region2: #{mul.19} parent=0 // pred_check
    _
  $region3: #{mul.19} parent=0 // pred_check_branch
    %3 = sbr.rel (0) target = $region5
  $region4: #{mul.19} parent=0 // pred_region
    _
  $region5: #{mul.19} parent=0 // pred_fallthru
    _
  %v4 = vld [vmem:[%s0] sm:$0xff]
  %5 = vst [vmem:[%s1] sm:$0xff] %v4
  %s6 = scalar_lea.vmem %s0, 16
  %v7 = vld [vmem:[%s6] sm:$0xff]
  %s8 = scalar_lea.vmem %s1, 64
  %9 = vst [vmem:[%s8] sm:$0xff] %v7
  %s10 = scalar_lea.vmem %s0, 32
  %v11 = vld [vmem:[%s10] sm:$0xff]
  %s12 = scalar_lea.vmem %s1, 128
  %13 = vst [vmem:[%s12] sm:$0xff] %v11
  %s14 = scalar_lea.vmem %s0, 48
  %v15 = vld [vmem:[%s14] sm:$0xff]
  %s16 = scalar_lea.vmem %s1, 192
  %17 = vst [vmem:[%s16] sm:$0xff] %v15
  %s18 = scalar_lea.vmem %s0, 64
  %v19 = vld [vmem:[%s18] sm:$0xff]
  %s20 = scalar_lea.vmem %s1, 256
  %21 = vst [vmem:[%s20] sm:$0xff] %v19
  %s22 = scalar_lea.vmem %s0, 80
  %v23 = vld [vmem:[%s22] sm:$0xff]
  %s24 = scalar_lea.vmem %s1, 320
  %25 = vst [vmem:[%s24] sm:$0xff] %v23
  %s26 = scalar_lea.vmem %s0, 96
  %v27 = vld [vmem:[%s26] sm:$0xff]
  %s28 = scalar_lea.vmem %s1, 384
  %29 = vst [vmem:[%s28] sm:$0xff] %v27
  %s30 = scalar_lea.vmem %s0, 112
  %v31 = vld [vmem:[%s30] sm:$0xff]
  %s32 = scalar_lea.vmem %s1, 448
  %33 = vst [vmem:[%s32] sm:$0xff] %v31
  %s34 = scalar_lea.vmem %s0, 128
  %v35 = vld [vmem:[%s34] sm:$0xff]
  %s36 = scalar_lea.vmem %s1, 512
  %37 = vst [vmem:[%s36] sm:$0xff] %v35
  %s38 = scalar_lea.vmem %s1, 16
  %39 = vst [vmem:[%s38] sm:$0xff] %v4
  %s40 = scalar_lea.vmem %s1, 80
  %41 = vst [vmem:[%s40] sm:$0xff] %v7
  %s42 = scalar_lea.vmem %s1, 144
  %43 = vst [vmem:[%s42] sm:$0xff] %v11
  %s44 = scalar_lea.vmem %s1, 208
  %45 = vst [vmem:[%s44] sm:$0xff] %v15
  %s46 = scalar_lea.vmem %s1, 272
  %47 = vst [vmem:[%s46] sm:$0xff] %v19
  %s48 = scalar_lea.vmem %s1, 336
  %49 = vst [vmem:[%s48] sm:$0xff] %v23
  %s50 = scalar_lea.vmem %s1, 400
  %51 = vst [vmem:[%s50] sm:$0xff] %v27
  %s52 = scalar_lea.vmem %s1, 464
  %53 = vst [vmem:[%s52] sm:$0xff] %v31
  %s54 = scalar_lea.vmem %s1, 528
  %55 = vst [vmem:[%s54] sm:$0xff] %v35
  %s56 = scalar_lea.vmem %s1, 32
  %57 = vst [vmem:[%s56] sm:$0xff] %v4
  %s58 = scalar_lea.vmem %s1, 96
  %59 = vst [vmem:[%s58] sm:$0xff] %v7
  %s60 = scalar_lea.vmem %s1, 160
  %61 = vst [vmem:[%s60] sm:$0xff] %v11
  %s62 = scalar_lea.vmem %s1, 224
  %63 = vst [vmem:[%s62] sm:$0xff] %v15
  %s64 = scalar_lea.vmem %s1, 288
  %65 = vst [vmem:[%s64] sm:$0xff] %v19
  %s66 = scalar_lea.vmem %s1, 352
  %67 = vst [vmem:[%s66] sm:$0xff] %v23
  %s68 = scalar_lea.vmem %s1, 416
  %69 = vst [vmem:[%s68] sm:$0xff] %v27
  %s70 = scalar_lea.vmem %s1, 480
  %71 = vst [vmem:[%s70] sm:$0xff] %v31
  %s72 = scalar_lea.vmem %s1, 544
  %73 = vst [vmem:[%s72] sm:$0xff] %v35
  %s74 = scalar_lea.vmem %s1, 48
  %75 = vst [vmem:[%s74] sm:$0xff] %v4
  %s76 = scalar_lea.vmem %s1, 112
  %77 = vst [vmem:[%s76] sm:$0xff] %v7
  %s78 = scalar_lea.vmem %s1, 176
  %79 = vst [vmem:[%s78] sm:$0xff] %v11
  %s80 = scalar_lea.vmem %s1, 240
  %81 = vst [vmem:[%s80] sm:$0xff] %v15
  %s82 = scalar_lea.vmem %s1, 304
  %83 = vst [vmem:[%s82] sm:$0xff] %v19
  %s84 = scalar_lea.vmem %s1, 368
  %85 = vst [vmem:[%s84] sm:$0xff] %v23
  %s86 = scalar_lea.vmem %s1, 432
  %87 = vst [vmem:[%s86] sm:$0xff] %v27
  %s88 = scalar_lea.vmem %s1, 496
  %89 = vst [vmem:[%s88] sm:$0xff] %v31
  %s90 = scalar_lea.vmem %s1, 560
  %91 = vst [vmem:[%s90] sm:$0xff] %v35
  %s92 = scalar_lea.vmem %s0, 8
  %v93 = vld [vmem:[%s92] sm:$0xff]
  %s94 = scalar_lea.vmem %s1, 8
  %95 = vst [vmem:[%s94] sm:$0xff] %v93
  %s96 = scalar_lea.vmem %s0, 24
  %v97 = vld [vmem:[%s96] sm:$0xff]
  %s98 = scalar_lea.vmem %s1, 72
  %99 = vst [vmem:[%s98] sm:$0xff] %v97
  %s100 = scalar_lea.vmem %s0, 40
  %v101 = vld [vmem:[%s100] sm:$0xff]
  %s102 = scalar_lea.vmem %s1, 136
  %103 = vst [vmem:[%s102] sm:$0xff] %v101
  %s104 = scalar_lea.vmem %s0, 56
  %v105 = vld [vmem:[%s104] sm:$0xff]
  %s106 = scalar_lea.vmem %s1, 200
  %107 = vst [vmem:[%s106] sm:$0xff] %v105
  %s108 = scalar_lea.vmem %s0, 72
  %v109 = vld [vmem:[%s108] sm:$0xff]
  %s110 = scalar_lea.vmem %s1, 264
  %111 = vst [vmem:[%s110] sm:$0xff] %v109
  %s112 = scalar_lea.vmem %s0, 88
  %v113 = vld [vmem:[%s112] sm:$0xff]
  %s114 = scalar_lea.vmem %s1, 328
  %115 = vst [vmem:[%s114] sm:$0xff] %v113
  %s116 = scalar_lea.vmem %s0, 104
  %v117 = vld [vmem:[%s116] sm:$0xff]
  %s118 = scalar_lea.vmem %s1, 392
  %119 = vst [vmem:[%s118] sm:$0xff] %v117
  %s120 = scalar_lea.vmem %s0, 120
  %v121 = vld [vmem:[%s120] sm:$0xff]
  %s122 = scalar_lea.vmem %s1, 456
  %123 = vst [vmem:[%s122] sm:$0xff] %v121
  %s124 = scalar_lea.vmem %s0, 136
  %v125 = vld [vmem:[%s124] sm:$0xff]
  %s126 = scalar_lea.vmem %s1, 520
  %127 = vst [vmem:[%s126] sm:$0xff] %v125
  %s128 = scalar_lea.vmem %s1, 24
  %129 = vst [vmem:[%s128] sm:$0xff] %v93
  %s130 = scalar_lea.vmem %s1, 88
  %131 = vst [vmem:[%s130] sm:$0xff] %v97
  %s132 = scalar_lea.vmem %s1, 152
  %133 = vst [vmem:[%s132] sm:$0xff] %v101
  %s134 = scalar_lea.vmem %s1, 216
  %135 = vst [vmem:[%s134] sm:$0xff] %v105
  %s136 = scalar_lea.vmem %s1, 280
  %137 = vst [vmem:[%s136] sm:$0xff] %v109
  %s138 = scalar_lea.vmem %s1, 344
  %139 = vst [vmem:[%s138] sm:$0xff] %v113
  %s140 = scalar_lea.vmem %s1, 408
  %141 = vst [vmem:[%s140] sm:$0xff] %v117
  %s142 = scalar_lea.vmem %s1, 472
  %143 = vst [vmem:[%s142] sm:$0xff] %v121
  %s144 = scalar_lea.vmem %s1, 536
  %145 = vst [vmem:[%s144] sm:$0xff] %v125
  %s146 = scalar_lea.vmem %s1, 40
  %147 = vst [vmem:[%s146] sm:$0xff] %v93
  %s148 = scalar_lea.vmem %s1, 104
  %149 = vst [vmem:[%s148] sm:$0xff] %v97
  %s150 = scalar_lea.vmem %s1, 168
  %151 = vst [vmem:[%s150] sm:$0xff] %v101
  %s152 = scalar_lea.vmem %s1, 232
  %153 = vst [vmem:[%s152] sm:$0xff] %v105
  %s154 = scalar_lea.vmem %s1, 296
  %155 = vst [vmem:[%s154] sm:$0xff] %v109
  %s156 = scalar_lea.vmem %s1, 360
  %157 = vst [vmem:[%s156] sm:$0xff] %v113
  %s158 = scalar_lea.vmem %s1, 424
  %159 = vst [vmem:[%s158] sm:$0xff] %v117
  %s160 = scalar_lea.vmem %s1, 488
  %161 = vst [vmem:[%s160] sm:$0xff] %v121
  %s162 = scalar_lea.vmem %s1, 552
  %163 = vst [vmem:[%s162] sm:$0xff] %v125
  %s164 = scalar_lea.vmem %s1, 56
  %165 = vst [vmem:[%s164] sm:$0xff] %v93
  %s166 = scalar_lea.vmem %s1, 120
  %167 = vst [vmem:[%s166] sm:$0xff] %v97
  %s168 = scalar_lea.vmem %s1, 184
  %169 = vst [vmem:[%s168] sm:$0xff] %v101
  %s170 = scalar_lea.vmem %s1, 248
  %171 = vst [vmem:[%s170] sm:$0xff] %v105
  %s172 = scalar_lea.vmem %s1, 312
  %173 = vst [vmem:[%s172] sm:$0xff] %v109
  %s174 = scalar_lea.vmem %s1, 376
  %175 = vst [vmem:[%s174] sm:$0xff] %v113
  %s176 = scalar_lea.vmem %s1, 440
  %177 = vst [vmem:[%s176] sm:$0xff] %v117
  %s178 = scalar_lea.vmem %s1, 504
  %179 = vst [vmem:[%s178] sm:$0xff] %v121
  %s180 = scalar_lea.vmem %s1, 568
  %181 = vst [vmem:[%s180] sm:$0xff] %v125

</llo_original>
